<compile_context>
chip_gen: v6e
topology: v6e:2x2x1
jax: 0.10.0
libtpu: 0.0.40
codegen_flags: <defaults>
</compile_context>

<pallas_src>
import functools
import math

import jax
import jax.numpy as jnp
from jax.experimental import pallas as pl
from jax.experimental.pallas import tpu as pltpu


def _round_up(x, m):
    return (x + m - 1) // m * m


@functools.lru_cache(maxsize=1)
def _roll_moves_to_higher_lanes():
    """True iff pltpu.roll matches jnp.roll (out[l] = in[l - shift]).

    Probed once per process with a tiny kernel.  Must be called outside jit
    (the wrapper below is not jitted; the result is a Python bool).
    """
    def probe(x_ref, o_ref):
        o_ref[...] = pltpu.roll(x_ref[...], 1, axis=1)

    x = jax.lax.broadcasted_iota(jnp.int32, (8, 128), 1)
    y = pl.pallas_call(
        probe, out_shape=jax.ShapeDtypeStruct((8, 128), jnp.int32))(x)
    return bool(y[0, 1] == 0)


def _window_sum(xw, width):
    """Sum of `width` consecutive lanes (binary-decomposed rolling windows).

    The full-window sums land on lane phase width-1 (jnp.roll direction) or 0
    (opposite direction); the host-built mask selects the correct phase, so
    the kernel is correct under either rotate convention.
    """
    acc, acc_len = None, 0
    win, win_len = xw, 1
    rem = width
    while True:
        if rem & 1:
            if acc is None:
                acc, acc_len = win, win_len
            else:
                acc = win + pltpu.roll(acc, win_len, axis=1)
                acc_len += win_len
        rem >>= 1
        if rem == 0:
            break
        win = win + pltpu.roll(win, win_len, axis=1)
        win_len *= 2
    return acc


def _make_kernel(feature_dim):
    def kernel(x_ref, wt_ref, m_ref, b_ref, o_ref):
        # x_ref : (bB, bL)  flat (node, feature) lanes, native dtype
        # wt_ref: (1, bL)   periodic weight pattern, already scaled by 1/H
        # m_ref : (1, bL)   1.0 on the one lane per node holding the full sum
        # b_ref : (1,)      bias / H (SMEM scalar)
        # o_ref : (bB, 1)   f32 output block, resident across the k axis
        k = pl.program_id(1)

        @pl.when(k == 0)
        def _init():
            o_ref[...] = jnp.zeros_like(o_ref)

        xw = x_ref[...].astype(jnp.float32) * wt_ref[...]       # (bB, bL)
        s = _window_sum(xw, feature_dim)                        # conv / H
        v = jnp.maximum(s + b_ref[0], 0.0)                      # + bias/H, ReLU
        # Select the one lane per node that carries the full conv sum; partial
        # windows and padded lanes are dropped (where, not multiply, so any
        # junk in unselected lanes cannot poison the sum).
        v = jnp.where(m_ref[...] != 0.0, v, 0.0)
        o_ref[...] += jnp.sum(v, axis=1, keepdims=True)

    return kernel


def critic_forward(p_net_x, weight, bias, *,
                   block_bytes=8 * 1024 * 1024,
                   max_lanes_per_block=128 * 1024):
    """Pallas forward of virne `Critic`:
         Conv2d(1, 1, (1, F)) -> Flatten -> ReLU -> mean(dim=1)
    p_net_x: (B, 1, H, F); weight: (1, 1, 1, F); bias: (1,). Returns (B,) f32.
    """
    B, C, H, F = p_net_x.shape
    assert C == 1
    L = H * F

    # x keeps its native (node-major, feature-minor) memory order; reading it
    # as (B, H*F) gives lane-dense, contiguous DMA rows with no transpose pass.
    x = p_net_x.reshape(B, L)
    itemsize = jnp.dtype(x.dtype).itemsize

    # ---- tiling ------------------------------------------------------------
    B8 = _round_up(B, 8)
    # Keep >=2 batch tiles when possible so both v7x TensorCores get work.
    bB_hi = B8 if B8 < 16 else max(8, (B8 // 2) // 8 * 8)
    bB_hi = min(bB_hi, 1024)

    unit = math.lcm(F, 128)      # lane blocks must not split a node's features
    max_lanes = max(unit, min(max_lanes_per_block,
                              block_bytes // (8 * itemsize)))
    if L <= max_lanes:
        # Whole reduction extent in one block: single pass, no accumulation
        # steps, and no padding of x along the lane axis.
        bL, n_k = L, 1
        bB = min(bB_hi, max(8, (block_bytes // (L * itemsize)) // 8 * 8))
    else:
        bB = 8
        bL = max(unit, (max_lanes // unit) * unit)
        n_k = -(-L // bL)

    L_pad = n_k * bL
    B_pad = _round_up(B, bB)
    n_i = B_pad // bB

    if (B_pad, L_pad) != (B, L):
        # Single fused pad (only when block sizes do not divide the shape);
        # the common large-batch single-lane-block case pays nothing here.
        x = jnp.pad(x, ((0, B_pad - B), (0, L_pad - L)))

    # ---- small host-side constants (weight pattern / select mask) ----------
    inv_h = 1.0 / H  # fold the mean into w and b: relu(z)/H == relu(z/H)
    w_vec = weight.reshape(F).astype(jnp.float32) * inv_h
    wt = jnp.tile(w_vec, bL // F).reshape(1, bL)
    b_s = bias.reshape(1).astype(jnp.float32) * inv_h

    phase = (F - 1) if _roll_moves_to_higher_lanes() else 0
    lane = jnp.arange(L_pad, dtype=jnp.int32)
    mask = (((lane % F) == phase) & (lane < L)).astype(jnp.float32)
    mask = mask.reshape(1, L_pad)

    # ---- VMEM budget (covers double-buffered x block + wt/mask buffers) ----
    est = (2 * bB * bL * itemsize          # x block, double buffered
           + 4 * 8 * bL * 4                # wt + mask (sublane-padded (1, bL))
           + 4 * bB * 4 + (1 << 20))
    vmem_limit = int(min(48 * 1024 * 1024, max(16 * 1024 * 1024, est)))

    out = pl.pallas_call(
        _make_kernel(F),
        out_shape=jax.ShapeDtypeStruct((B_pad, 1), jnp.float32),
        grid_spec=pltpu.PrefetchScalarGridSpec(
            num_scalar_prefetch=0,
            grid=(n_i, n_k),
            in_specs=[
                pl.BlockSpec((bB, bL), lambda i, k: (i, k)),      # x
                pl.BlockSpec((1, bL), lambda i, k: (0, 0)),       # weight pat.
                pl.BlockSpec((1, bL), lambda i, k: (0, k)),       # select mask
                pl.BlockSpec(memory_space=pltpu.MemorySpace.SMEM),  # bias
            ],
            out_specs=pl.BlockSpec((bB, 1), lambda i, k: (i, 0)),
        ),
        compiler_params=pltpu.CompilerParams(
            dimension_semantics=("parallel", "arbitrary"),
            vmem_limit_bytes=vmem_limit),
    )(x, wt, mask, b_s)
    return out[:B, 0]  # (B,)


def _reference(p_net_x, weight, bias):
    B, _, H, F = p_net_x.shape
    x = p_net_x.reshape(B, H, F).astype(jnp.float32)
    w = weight.reshape(F).astype(jnp.float32)
    v = jnp.maximum(jnp.einsum("bhf,f->bh", x, w) + bias[0], 0.0)
    return v.mean(axis=1)


if __name__ == "__main__":
    # p_net_x: (batch, 1 channel, num_nodes, feature_dim)
    B, H, feature_dim = 2, 200, 8

    key = jax.random.PRNGKey(0)
    kx, kw, kb = jax.random.split(key, 3)

    p_net_x = jax.random.normal(kx, (B, 1, H, feature_dim), dtype=jnp.float32)

    # Deterministic Conv2d(1, 1, (1, feature_dim)) params (kaiming-uniform-like).
    fan_in = 1 * 1 * feature_dim
    bound = 1.0 / jnp.sqrt(jnp.float32(fan_in))
    weight = jax.random.uniform(
        kw, (1, 1, 1, feature_dim), minval=-bound, maxval=bound, dtype=jnp.float32)
    bias = jax.random.uniform(kb, (1,), minval=-bound, maxval=bound,
                              dtype=jnp.float32)

    ref = _reference(p_net_x, weight, bias)

    # Fast path: whole H*F extent in one lane block (no reduction steps).
    values = critic_forward(p_net_x, weight, bias)
    jax.block_until_ready(values)
    assert values.shape == (B,)
    assert jnp.allclose(values, ref, atol=1e-5, rtol=1e-5), (values, ref)

    # Tiled path: force several lane blocks to exercise the multi-step
    # reduction, the ragged-tail masking and the input padding.
    values_tiled = critic_forward(p_net_x, weight, bias, max_lanes_per_block=512)
    jax.block_until_ready(values_tiled)
    assert jnp.allclose(values_tiled, ref, atol=1e-5, rtol=1e-5), (values_tiled, ref)

    print("KERNEL_OK")
</pallas_src>

<mosaic_0001>
module attributes {stable_mosaic.version = 11 : i64} {
  func.func @probe(%arg0: memref<8x128xi32, #tpu.memory_space<vmem>>, %arg1: memref<8x128xi32, #tpu.memory_space<vmem>>) attributes {dimension_semantics = [], scalar_prefetch = 0 : i64, scratch_operands = 0 : i64, tpu.core_type = #tpu.core_type<tc>} {
    %c0 = arith.constant 0 : index
    %c0_0 = arith.constant 0 : index
    %0 = vector.load %arg0[%c0, %c0_0] : memref<8x128xi32, #tpu.memory_space<vmem>>, vector<8x128xi32>
    %c1_i32 = arith.constant 1 : i32
    %1 = tpu.dynamic_rotate %0 by %c1_i32 dim 1 : vector<8x128xi32>, i32 -> vector<8x128xi32>
    %c0_1 = arith.constant 0 : index
    %c0_2 = arith.constant 0 : index
    %2 = vector.load %arg1[%c0_1, %c0_2] : memref<8x128xi32, #tpu.memory_space<vmem>>, vector<8x128xi32>
    tpu.vector_store %arg1[%c0_1, %c0_2], %1 {strides = array<i32>} : memref<8x128xi32, #tpu.memory_space<vmem>>, vector<8x128xi32>,
    return
  }
}

</mosaic_0001>

<llo_original>
// kernel: tpu_custom_call.1
$region0: #{tpu_custom_call.1}
  #allocation0 [shape = 'u32[]', space=smem, size = 0x4, offset = 0x4, fixed_abs, tag = 'smem constant byte address 0x4 - core index']
  #allocation1 [shape = 'u32[144,128]{1,0:T(1,128)}', space=vmem, size = 0x12000, scoped, tag = 'internal scratch']
  %s0 = inlined_call_operand.hbm [shape: s32[8,128], index: 0, kind: input, shape index: {}]
  %s1 = inlined_call_operand.hbm [shape: s32[8,128], index: 1, kind: output, shape index: {}]
  %s2 = sld [smem:[#allocation0]]
  $region18: #{tpu_custom_call.1} parent=0
    _
  %s4 = ssub.s32 1, %s2
  %s5 = scalar_select 0, %s4, %s2
  $region1: #{tpu_custom_call.1} parent=0
    #allocation2 [shape = 'u8[4096]{0}', space=vmem, size = 0x1000, scoped, tag = 'input window, operand 0, single buffered']
    #allocation3 [shape = 's32[1]{0}', space=sflag, size = 0x4, scoped, tag = 'scoped memory for tpu_custom_call.1']
    #allocation4 [shape = 's32[1]{0}', space=sflag, size = 0x4, scoped, tag = 'scoped memory for tpu_custom_call.1']
    #allocation5 [shape = 'u8[4096]{0}', space=vmem, size = 0x1000, scoped, tag = 'output window, operand 0, single buffered']
    %6 = vsyncpa [#allocation3], 0
    %7 = vsyncpa [#allocation4], 0
    // Predicated region
    $region2: #{tpu_custom_call.1} parent=1 // pred_check
      _
    $region3: #{tpu_custom_call.1} parent=1 // pred_check_branch
      %9 = sbr.rel (0) target = $region5
    $region4: #{tpu_custom_call.1} parent=1 // pred_region
      %s11 = ssub.s32 128, 128
      %12 = vsyncadd [#allocation3], %s11
      %s14 = sshll.u32 [#allocation2], 4
      %s15 = int_to_ptr.vmem [resolvable:$true] %s14
      %17 = dma.hbm_to_vmem [thread:$0]  %s0, 128, %s15, [#allocation3]
    $region5: #{tpu_custom_call.1} parent=1 // pred_fallthru
      _
    // Predicated region
    $region6: #{tpu_custom_call.1} parent=1 // pred_check
      _
    $region7: #{tpu_custom_call.1} parent=1 // pred_check_branch
      %19 = sbr.rel (0) target = $region9
    $region8: #{tpu_custom_call.1} parent=1 // pred_region
      %20 = dma.done [#allocation3], 128
    $region9: #{tpu_custom_call.1} parent=1 // pred_fallthru
      _
    %v21 = vld [vmem:[#allocation2] sm:$0xff]
    %22 = vrot.lane.b32.xlu0 %v21, 1
    %v23 = vpop.permute.xlu0 %22
    %24 = vst [vmem:[#allocation5] sm:$0xff] %v23
    // Predicated region
    $region10: #{tpu_custom_call.1} parent=1 // pred_check
      _
    $region11: #{tpu_custom_call.1} parent=1 // pred_check_branch
      %26 = sbr.rel (0) target = $region13
    $region12: #{tpu_custom_call.1} parent=1 // pred_region
      %s28 = ssub.s32 128, 128
      %29 = vsyncadd [#allocation4], %s28
      %s31 = sshll.u32 [#allocation5], 4
      %s32 = int_to_ptr.vmem [resolvable:$true] %s31
      %34 = dma.vmem_to_hbm [thread:$0]  %s32, 128, %s1, [#allocation4]
    $region13: #{tpu_custom_call.1} parent=1 // pred_fallthru
      _
    // Predicated region
    $region14: #{tpu_custom_call.1} parent=1 // pred_check
      _
    $region15: #{tpu_custom_call.1} parent=1 // pred_check_branch
      %36 = sbr.rel (0) target = $region17
    $region16: #{tpu_custom_call.1} parent=1 // pred_region
      %37 = dma.done [#allocation4], 128
    $region17: #{tpu_custom_call.1} parent=1 // pred_fallthru
      _
    %38 = vsyncpa [#allocation3], 1
    %39 = vsyncpa [#allocation4], 1

</llo_original>
